<compile_context>
chip_gen: v5e
topology: v5e:2x2
jax: 0.10.0
libtpu: 0.0.40
codegen_flags: <defaults>
</compile_context>

<pallas_src>
import jax
import jax.numpy as jnp
from jax.experimental import pallas as pl
from jax.experimental.pallas import tpu as pltpu

_LANE = 128
_MIB = 2**20


def _round_up(x, m):
    return -(-x // m) * m


def _choose_hw_tile(C, HW, itemsize, target_block_bytes):
    """Pick a lane-dense HW tile (multiple of 128, or the full HW extent)."""
    c_pad = _round_up(C, 8)
    max_lanes = max(_LANE,
                    (target_block_bytes // max(1, c_pad * itemsize)) // _LANE * _LANE)
    hw128 = _round_up(HW, _LANE)
    if hw128 <= max_lanes:
        return HW                      # single block covering the full (legal) extent
    if HW % _LANE == 0:
        # prefer a multiple-of-128 tile that divides HW exactly (no ragged tail)
        k_total, k_max = HW // _LANE, max_lanes // _LANE
        for k in range(k_max, 0, -1):
            if k_total % k == 0 and 4 * k >= k_max:
                return k * _LANE
    return max_lanes                   # ragged tail handled by Pallas's masked last block


def _scse_resident_kernel(x_ref, ws_ref, w1_ref, b1_ref, w2_ref, b2_ref, bs_ref, o_ref):
    """One batch element fully resident in VMEM: pool + excite + both gates fused."""
    x = x_ref[0]                                                          # (C, HW)
    xf = x.astype(jnp.float32)

    # cSE squeeze + excite: global avg pool -> FC -> ELU -> FC -> sigmoid
    y = jnp.mean(xf, axis=1, keepdims=True)                               # (C, 1) f32
    h = jnp.dot(w1_ref[...], y, preferred_element_type=jnp.float32) + b1_ref[...]
    # ELU(alpha=1); exp(min(h,0)) keeps the untaken branch finite (== expm1 up to rounding)
    h = jnp.where(h > 0, h, jnp.exp(jnp.minimum(h, 0.0)) - 1.0)           # (Cr, 1)
    g = jnp.dot(w2_ref[...], h, preferred_element_type=jnp.float32) + b2_ref[...]
    g = jax.nn.sigmoid(g)                                                 # (C, 1)

    # sSE spatial gate: 1x1 conv (C -> 1) + sigmoid
    s = jnp.dot(ws_ref[...], x, preferred_element_type=jnp.float32)       # (1, HW)
    s = jax.nn.sigmoid(s + bs_ref[0])

    # fused gate application: x*s + x*g == x * (s + g)
    gate = (s + g).astype(x.dtype)                                        # (C, HW)
    o_ref[0] = (x * gate).astype(o_ref.dtype)


def _scse_tiled_kernel(x_ref, g_ref, ws_ref, bs_ref, o_ref):
    """One lane-dense HW tile; channel gate g precomputed in the wrapper (tiny)."""
    x = x_ref[0]                                                          # (C, HW_T)
    s = jnp.dot(ws_ref[...], x, preferred_element_type=jnp.float32)       # (1, HW_T)
    s = jax.nn.sigmoid(s + bs_ref[0])
    gate = (s + g_ref[0]).astype(x.dtype)                                 # (C, HW_T)
    o_ref[0] = (x * gate).astype(o_ref.dtype)


def scse_layer(x, w_s, b_s, w1, b1, w2, b2, *,
               max_resident_bytes=4 * _MIB,
               target_block_bytes=6 * _MIB,
               hw_tile=None):
    """scSE forward.  x: (B, C, H, W) -> (B, C, H, W).

    hw_tile (a multiple of 128) forces the tiled path with that tile; used for testing.
    """
    B, C, H, W = x.shape
    HW = H * W
    Cr = w1.shape[0]
    itemsize = jnp.dtype(x.dtype).itemsize
    c_pad = _round_up(C, 8)
    hw128 = _round_up(HW, _LANE)

    x2 = x.reshape(B, C, HW)                    # free reshape, no HBM copy

    # small parameters: pre-shaped / pre-cast once (no per-grid-step casts in-kernel)
    ws2 = w_s.reshape(1, C).astype(x.dtype)     # sSE 1x1 conv weight (matches x dtype)
    bs1 = b_s.reshape(1).astype(jnp.float32)    # sSE conv bias -> SMEM scalar
    w1f = w1.astype(jnp.float32)
    b1c = b1.reshape(Cr, 1).astype(jnp.float32)
    w2f = w2.astype(jnp.float32)
    b2c = b2.reshape(C, 1).astype(jnp.float32)

    slab_bytes = c_pad * hw128 * itemsize       # VMEM footprint of one batch element

    if hw_tile is None and slab_bytes <= max_resident_bytes:
        # -------- resident-slab path: 1 HBM read + 1 HBM write of x, total ----------
        slab_f32 = c_pad * hw128 * 4
        vmem_limit = int(min(48 * _MIB,
                             max(32 * _MIB, 4 * slab_bytes + 2 * slab_f32 + 4 * _MIB)))
        out = pl.pallas_call(
            _scse_resident_kernel,
            out_shape=jax.ShapeDtypeStruct((B, C, HW), x.dtype),
            grid_spec=pltpu.PrefetchScalarGridSpec(
                num_scalar_prefetch=0,
                grid=(B,),
                in_specs=[
                    pl.BlockSpec((1, C, HW), lambda b: (b, 0, 0)),        # x slab
                    pl.BlockSpec((1, C), lambda b: (0, 0)),               # w_s
                    pl.BlockSpec((Cr, C), lambda b: (0, 0)),              # w1
                    pl.BlockSpec((Cr, 1), lambda b: (0, 0)),              # b1
                    pl.BlockSpec((C, Cr), lambda b: (0, 0)),              # w2
                    pl.BlockSpec((C, 1), lambda b: (0, 0)),               # b2
                    pl.BlockSpec(memory_space=pltpu.MemorySpace.SMEM),    # b_s
                ],
                out_specs=pl.BlockSpec((1, C, HW), lambda b: (b, 0, 0)),
            ),
            compiler_params=pltpu.CompilerParams(
                dimension_semantics=("parallel",),
                vmem_limit_bytes=vmem_limit,
            ),
        )(x2, ws2, w1f, b1c, w2f, b2c, bs1)
        return out.reshape(B, C, H, W)

    # -------- tiled path: HW tiled, channel gate precomputed (O(B*C*Cr), tiny) -------
    hw_t = int(hw_tile) if hw_tile is not None else _choose_hw_tile(
        C, HW, itemsize, target_block_bytes)
    num_hw_tiles = pl.cdiv(HW, hw_t)            # ragged tail masked by Pallas

    y = jnp.mean(x2.astype(jnp.float32), axis=2)                          # (B, C)
    h = y @ w1f.T + b1.astype(jnp.float32)
    h = jnp.where(h > 0, h, jnp.exp(jnp.minimum(h, 0.0)) - 1.0)           # ELU(alpha=1)
    g3 = jax.nn.sigmoid(h @ w2f.T + b2.astype(jnp.float32)).reshape(B, C, 1)

    block_bytes = c_pad * hw_t * itemsize
    vmem_limit = int(min(48 * _MIB, max(32 * _MIB, 4 * block_bytes + 2 * _MIB)))

    out = pl.pallas_call(
        _scse_tiled_kernel,
        out_shape=jax.ShapeDtypeStruct((B, C, HW), x.dtype),
        grid_spec=pltpu.PrefetchScalarGridSpec(
            num_scalar_prefetch=0,
            grid=(B, num_hw_tiles),
            in_specs=[
                pl.BlockSpec((1, C, hw_t), lambda b, t: (b, 0, t)),       # x tile
                pl.BlockSpec((1, C, 1), lambda b, t: (b, 0, 0)),          # channel gate
                pl.BlockSpec((1, C), lambda b, t: (0, 0)),                # w_s
                pl.BlockSpec(memory_space=pltpu.MemorySpace.SMEM),        # b_s
            ],
            out_specs=pl.BlockSpec((1, C, hw_t), lambda b, t: (b, 0, t)),
        ),
        compiler_params=pltpu.CompilerParams(
            # stateless kernel => both axes parallel (v7x 2-TC sharding over HW too)
            dimension_semantics=("parallel", "parallel"),
            vmem_limit_bytes=vmem_limit,
        ),
    )(x2, g3, ws2, bs1)
    return out.reshape(B, C, H, W)


def _reference(x, w_s, b_s, w1, b1, w2, b2):
    """Pure-JAX reference mirroring the PyTorch forward."""
    B, C, H, W = x.shape
    # sSE
    s = jnp.einsum("oc,bchw->bohw", w_s.reshape(1, C), x) + b_s.reshape(1, 1, 1, 1)
    sx = x * jax.nn.sigmoid(s)
    # cSE
    y = x.mean(axis=(2, 3))                                       # (B, C)
    h = y @ w1.T + b1
    h = jnp.where(h > 0, h, jnp.exp(jnp.minimum(h, 0.0)) - 1.0)   # ELU(alpha=1)
    g = jax.nn.sigmoid(h @ w2.T + b2)                             # (B, C)
    cx = x * g[:, :, None, None]
    return sx + cx


if __name__ == "__main__":
    key = jax.random.PRNGKey(0)
    kx, k1, k2, k3, k4, k5, k6, kx2 = jax.random.split(key, 8)

    # ---- Case 1: small shape -> resident-slab path (pool + excite fused in-kernel) ----
    B, C, H, W = 2, 4, 16, 16
    Cr = C // 2
    x = jax.random.normal(kx, (B, C, H, W), dtype=jnp.float32)
    w_s = jax.random.normal(k1, (1, C, 1, 1), dtype=jnp.float32) * 0.5   # sSE conv weight
    b_s = jax.random.normal(k2, (1,), dtype=jnp.float32) * 0.1           # sSE conv bias
    w1 = jax.random.normal(k3, (Cr, C), dtype=jnp.float32) * 0.5         # cSE fc1 weight
    b1 = jax.random.normal(k4, (Cr,), dtype=jnp.float32) * 0.1           # cSE fc1 bias
    w2 = jax.random.normal(k5, (C, Cr), dtype=jnp.float32) * 0.5         # cSE fc2 weight
    b2 = jax.random.normal(k6, (C,), dtype=jnp.float32) * 0.1            # cSE fc2 bias

    out = jax.block_until_ready(scse_layer(x, w_s, b_s, w1, b1, w2, b2))
    ref = _reference(x, w_s, b_s, w1, b1, w2, b2)
    assert out.shape == (B, C, H, W)
    assert jnp.allclose(out, ref, atol=1e-5, rtol=1e-5), "resident path mismatch"

    # ---- Case 2: force the HW-tiled path with a ragged tail (HW=260, tile=128) ----
    B2, C2, H2, W2 = 2, 8, 13, 20
    Cr2 = C2 // 2
    ks = jax.random.split(kx2, 7)
    x_b = jax.random.normal(ks[0], (B2, C2, H2, W2), dtype=jnp.float32)
    w_sb = jax.random.normal(ks[1], (1, C2, 1, 1), dtype=jnp.float32) * 0.5
    b_sb = jax.random.normal(ks[2], (1,), dtype=jnp.float32) * 0.1
    w1b = jax.random.normal(ks[3], (Cr2, C2), dtype=jnp.float32) * 0.5
    b1b = jax.random.normal(ks[4], (Cr2,), dtype=jnp.float32) * 0.1
    w2b = jax.random.normal(ks[5], (C2, Cr2), dtype=jnp.float32) * 0.5
    b2b = jax.random.normal(ks[6], (C2,), dtype=jnp.float32) * 0.1

    out_b = jax.block_until_ready(
        scse_layer(x_b, w_sb, b_sb, w1b, b1b, w2b, b2b,
                   max_resident_bytes=0, hw_tile=128))
    ref_b = _reference(x_b, w_sb, b_sb, w1b, b1b, w2b, b2b)
    assert out_b.shape == (B2, C2, H2, W2)
    assert jnp.allclose(out_b, ref_b, atol=1e-5, rtol=1e-5), "tiled path mismatch"

    print("KERNEL_OK")
</pallas_src>

<mosaic_0001>
module attributes {stable_mosaic.version = 11 : i64} {
  func.func @_scse_resident_kernel(%arg0: i32, %arg1: memref<1x4x256xf32, #tpu.memory_space<vmem>>, %arg2: memref<1x4xf32, #tpu.memory_space<vmem>>, %arg3: memref<2x4xf32, #tpu.memory_space<vmem>>, %arg4: memref<2x1xf32, #tpu.memory_space<vmem>>, %arg5: memref<4x2xf32, #tpu.memory_space<vmem>>, %arg6: memref<4x1xf32, #tpu.memory_space<vmem>>, %arg7: memref<1xf32, #tpu.memory_space<smem>>, %arg8: memref<1x4x256xf32, #tpu.memory_space<vmem>>) attributes {dimension_semantics = [#tpu.dimension_semantics<parallel>], iteration_bounds = array<i64: 2>, scalar_prefetch = 0 : i64, scratch_operands = 0 : i64, tpu.core_type = #tpu.core_type<tc>, window_params = [{transform_indices = @transform_0, window_bounds = array<i64: 1, 4, 256>}, {pipeline_mode = #tpu.pipeline_mode<synchronous>, transform_indices = @transform_1, window_bounds = array<i64: 1, 4>}, {pipeline_mode = #tpu.pipeline_mode<synchronous>, transform_indices = @transform_2, window_bounds = array<i64: 2, 4>}, {pipeline_mode = #tpu.pipeline_mode<synchronous>, transform_indices = @transform_3, window_bounds = array<i64: 2, 1>}, {pipeline_mode = #tpu.pipeline_mode<synchronous>, transform_indices = @transform_4, window_bounds = array<i64: 4, 2>}, {pipeline_mode = #tpu.pipeline_mode<synchronous>, transform_indices = @transform_5, window_bounds = array<i64: 4, 1>}, {transform_indices = @transform_6, window_bounds = array<i64: 1>}, {transform_indices = @transform_7, window_bounds = array<i64: 1, 4, 256>}]} {
    %c0 = arith.constant 0 : index
    %c0_0 = arith.constant 0 : index
    %c0_1 = arith.constant 0 : index
    %0 = vector.load %arg1[%c0, %c0_0, %c0_1] : memref<1x4x256xf32, #tpu.memory_space<vmem>>, vector<1x4x256xf32>
    %1 = vector.shape_cast %0 : vector<1x4x256xf32> to vector<4x256xf32>
    %cst = arith.constant dense<0.000000e+00> : vector<4xf32>
    %2 = vector.multi_reduction <add>, %1, %cst [1] : vector<4x256xf32> to vector<4xf32>
    %3 = vector.shape_cast %2 : vector<4xf32> to vector<4x1xf32>
    %cst_2 = arith.constant 2.560000e+02 : f32
    %4 = vector.broadcast %cst_2 : f32 to vector<4x1xf32>
    %5 = arith.divf %3, %4 : vector<4x1xf32>
    %c0_3 = arith.constant 0 : index
    %c0_4 = arith.constant 0 : index
    %6 = vector.load %arg3[%c0_3, %c0_4] : memref<2x4xf32, #tpu.memory_space<vmem>>, vector<2x4xf32>
    %cst_5 = arith.constant dense<0.000000e+00> : vector<2x1xf32>
    %7 = tpu.matmul %6, %5, %cst_5 {dimension_numbers = #tpu.dot_dimension_numbers<[1], [0], [0], [1], [0, 0, 1, 1], [], []>} : vector<2x4xf32>, vector<4x1xf32>, vector<2x1xf32> -> vector<2x1xf32>
    %c0_6 = arith.constant 0 : index
    %c0_7 = arith.constant 0 : index
    %8 = vector.load %arg4[%c0_6, %c0_7] : memref<2x1xf32, #tpu.memory_space<vmem>>, vector<2x1xf32>
    %9 = arith.addf %7, %8 : vector<2x1xf32>
    %cst_8 = arith.constant 0.000000e+00 : f32
    %10 = vector.broadcast %cst_8 : f32 to vector<2x1xf32>
    %11 = arith.cmpf ogt, %9, %10 : vector<2x1xf32>
    %cst_9 = arith.constant 0.000000e+00 : f32
    %12 = vector.broadcast %cst_9 : f32 to vector<2x1xf32>
    %13 = arith.minimumf %9, %12 : vector<2x1xf32>
    %14 = math.exp %13 : vector<2x1xf32>
    %cst_10 = arith.constant 1.000000e+00 : f32
    %15 = vector.broadcast %cst_10 : f32 to vector<2x1xf32>
    %16 = arith.subf %14, %15 : vector<2x1xf32>
    %17 = arith.select %11, %9, %16 : vector<2x1xi1>, vector<2x1xf32>
    %c0_11 = arith.constant 0 : index
    %c0_12 = arith.constant 0 : index
    %18 = vector.load %arg5[%c0_11, %c0_12] : memref<4x2xf32, #tpu.memory_space<vmem>>, vector<4x2xf32>
    %cst_13 = arith.constant dense<0.000000e+00> : vector<4x1xf32>
    %19 = tpu.matmul %18, %17, %cst_13 {dimension_numbers = #tpu.dot_dimension_numbers<[1], [0], [0], [1], [0, 0, 1, 1], [], []>} : vector<4x2xf32>, vector<2x1xf32>, vector<4x1xf32> -> vector<4x1xf32>
    %c0_14 = arith.constant 0 : index
    %c0_15 = arith.constant 0 : index
    %20 = vector.load %arg6[%c0_14, %c0_15] : memref<4x1xf32, #tpu.memory_space<vmem>>, vector<4x1xf32>
    %21 = arith.addf %19, %20 : vector<4x1xf32>
    %22 = arith.negf %21 : vector<4x1xf32>
    %23 = math.exp %22 : vector<4x1xf32>
    %cst_16 = arith.constant 1.000000e+00 : f32
    %24 = vector.broadcast %cst_16 : f32 to vector<4x1xf32>
    %25 = arith.addf %24, %23 : vector<4x1xf32>
    %26 = arith.divf %24, %25 : vector<4x1xf32>
    %c0_17 = arith.constant 0 : index
    %c0_18 = arith.constant 0 : index
    %27 = vector.load %arg2[%c0_17, %c0_18] : memref<1x4xf32, #tpu.memory_space<vmem>>, vector<1x4xf32>
    %cst_19 = arith.constant dense<0.000000e+00> : vector<1x256xf32>
    %28 = tpu.matmul %27, %1, %cst_19 {dimension_numbers = #tpu.dot_dimension_numbers<[1], [0], [0], [1], [0, 0, 1, 1], [], []>} : vector<1x4xf32>, vector<4x256xf32>, vector<1x256xf32> -> vector<1x256xf32>
    %c0_20 = arith.constant 0 : index
    %29 = memref.load %arg7[%c0_20] : memref<1xf32, #tpu.memory_space<smem>>
    %30 = vector.broadcast %29 : f32 to vector<1x256xf32>
    %31 = arith.addf %28, %30 : vector<1x256xf32>
    %32 = arith.negf %31 : vector<1x256xf32>
    %33 = math.exp %32 : vector<1x256xf32>
    %cst_21 = arith.constant 1.000000e+00 : f32
    %34 = vector.broadcast %cst_21 : f32 to vector<1x256xf32>
    %35 = arith.addf %34, %33 : vector<1x256xf32>
    %36 = arith.divf %34, %35 : vector<1x256xf32>
    %37 = vector.broadcast %36 : vector<1x256xf32> to vector<4x256xf32>
    %38 = vector.broadcast %26 : vector<4x1xf32> to vector<4x256xf32>
    %39 = arith.addf %37, %38 : vector<4x256xf32>
    %40 = arith.mulf %1, %39 : vector<4x256xf32>
    %c0_22 = arith.constant 0 : index
    %c0_23 = arith.constant 0 : index
    %c0_24 = arith.constant 0 : index
    %41 = vector.load %arg8[%c0_22, %c0_23, %c0_24] : memref<1x4x256xf32, #tpu.memory_space<vmem>>, vector<1x4x256xf32>
    %42 = vector.shape_cast %41 : vector<1x4x256xf32> to vector<4x256xf32>
    %43 = vector.shape_cast %40 : vector<4x256xf32> to vector<1x4x256xf32>
    tpu.vector_store %arg8[%c0_22, %c0_23, %c0_24], %43 {strides = array<i32>} : memref<1x4x256xf32, #tpu.memory_space<vmem>>, vector<1x4x256xf32>,
    return
  }
  func.func @transform_0(%arg0: i32) -> (i32, i32, i32) {
    %c0_i32 = arith.constant 0 : i32
    %c0_i32_0 = arith.constant 0 : i32
    %c0_i32_1 = arith.constant 0 : i32
    return %arg0, %c0_i32, %c0_i32_0 : i32, i32, i32
  }
  func.func @transform_1(%arg0: i32) -> (i32, i32) {
    %c0_i32 = arith.constant 0 : i32
    %c0_i32_0 = arith.constant 0 : i32
    %c0_i32_1 = arith.constant 0 : i32
    return %c0_i32, %c0_i32_0 : i32, i32
  }
  func.func @transform_2(%arg0: i32) -> (i32, i32) {
    %c0_i32 = arith.constant 0 : i32
    %c0_i32_0 = arith.constant 0 : i32
    %c0_i32_1 = arith.constant 0 : i32
    return %c0_i32, %c0_i32_0 : i32, i32
  }
  func.func @transform_3(%arg0: i32) -> (i32, i32) {
    %c0_i32 = arith.constant 0 : i32
    %c0_i32_0 = arith.constant 0 : i32
    %c0_i32_1 = arith.constant 0 : i32
    return %c0_i32, %c0_i32_0 : i32, i32
  }
  func.func @transform_4(%arg0: i32) -> (i32, i32) {
    %c0_i32 = arith.constant 0 : i32
    %c0_i32_0 = arith.constant 0 : i32
    %c0_i32_1 = arith.constant 0 : i32
    return %c0_i32, %c0_i32_0 : i32, i32
  }
  func.func @transform_5(%arg0: i32) -> (i32, i32) {
    %c0_i32 = arith.constant 0 : i32
    %c0_i32_0 = arith.constant 0 : i32
    %c0_i32_1 = arith.constant 0 : i32
    return %c0_i32, %c0_i32_0 : i32, i32
  }
  func.func @transform_6(%arg0: i32) -> i32 {
    %c0_i32 = arith.constant 0 : i32
    %c0_i32_0 = arith.constant 0 : i32
    return %c0_i32 : i32
  }
  func.func @transform_7(%arg0: i32) -> (i32, i32, i32) {
    %c0_i32 = arith.constant 0 : i32
    %c0_i32_0 = arith.constant 0 : i32
    %c0_i32_1 = arith.constant 0 : i32
    return %arg0, %c0_i32, %c0_i32_0 : i32, i32, i32
  }
}

</mosaic_0001>

<llo_original>
// kernel: tpu_custom_call.1
$region0: #{tpu_custom_call.1}
  #allocation0 [shape = 'u32[]', space=smem, size = 0x4, offset = 0x4, fixed_abs, tag = 'smem constant byte address 0x4 - core index']
  #allocation1 [shape = 'u32[72,128]{1,0:T(1,128)}', space=vmem, size = 0x9000, scoped, tag = 'internal scratch']
  #allocation2 [shape = 'f32[1]{0:T(128)S(6)}', space=smem, size = 0x200, scoped, tag = 'scoped memory for tpu_custom_call.1']
  %s0 = inlined_call_operand.hbm [shape: f32[2,4,256], index: 0, kind: input, shape index: {}]
  %s1 = inlined_call_operand.vmem [shape: f32[1,4], index: 1, kind: input, shape index: {}]
  %s2 = inlined_call_operand.vmem [shape: f32[2,4], index: 2, kind: input, shape index: {}]
  %s3 = inlined_call_operand.vmem [shape: f32[2,1], index: 3, kind: input, shape index: {}]
  %s4 = inlined_call_operand.vmem [shape: f32[4,2], index: 4, kind: input, shape index: {}]
  %s5 = inlined_call_operand.vmem [shape: f32[4,1], index: 5, kind: input, shape index: {}]
  %s6 = inlined_call_operand.<no memory space> [shape: f32[1], index: 6, kind: input, shape index: {}]
  %s7 = inlined_call_operand.hbm [shape: f32[2,4,256], index: 7, kind: output, shape index: {}]
  %s8 = sld [smem:[#allocation0]]
  $region65: #{tpu_custom_call.1} parent=0
    _
  %s10 = ssub.s32 1, %s8
  %s11 = scalar_select 0, %s10, %s8
  %12 = sst [smem:[#allocation2]] %s6
  $region1: #{tpu_custom_call.1} parent=0
    #allocation3 [shape = 'u8[8192]{0}', space=vmem, size = 0x2000, scoped, tag = 'input window, operand 0']
    #allocation4 [shape = 's32[2]{0}', space=sflag, size = 0x8, scoped, tag = 'scoped memory for tpu_custom_call.1']
    #allocation5 [shape = 's32[2]{0}', space=sflag, size = 0x8, scoped, tag = 'scoped memory for tpu_custom_call.1']
    #allocation6 [shape = 'u8[8192]{0}', space=vmem, size = 0x2000, scoped, tag = 'output window, operand 0']
    %13 = vsyncpa [#allocation4], 0
    %s14 = scalar_lea.sflag [#allocation4], 1
    %15 = vsyncpa %s14, 0
    %16 = vsyncpa [#allocation5], 0
    %s17 = scalar_lea.sflag [#allocation5], 1
    %18 = vsyncpa %s17, 0
    loop: start=0, step=1, limit=4
    $region2: #{tpu_custom_call.1} parent=1 // loop_pre_header
      _
    $region3: #{tpu_custom_call.1} parent=1 // loop_header
      %s20 = sphi 0, %s24
      %p21 = scmp.ge.s32.totalorder %s20, 4
      %s30 = sphi 0, %s32
      %s33 = sphi 0, %s30
      %s34 = sphi 0, %s33
      %s50 = sphi 0, %s34
      %s54 = sphi 0, %s54
      %s56 = sphi 0, %s54
      %s57 = sphi 0, %s56
      %s71 = sphi 0, %s57
      %s75 = sphi 0, %s75
      %s77 = sphi 0, %s75
      %s78 = sphi 0, %s77
      %s92 = sphi 0, %s78
      %s96 = sphi 0, %s96
      %s98 = sphi 0, %s96
      %s99 = sphi 0, %s98
      %s113 = sphi 0, %s99
      %s117 = sphi 0, %s117
      %s119 = sphi 0, %s117
      %s120 = sphi 0, %s119
      %s134 = sphi 0, %s120
      %s138 = sphi 0, %s138
      %s140 = sphi 0, %s138
      %s141 = sphi 0, %s140
      %s155 = sphi 0, %s141
      %s159 = sphi 0, %s159
      %s161 = sphi 0, %s159
      %s162 = sphi 0, %s161
      %s176 = sphi 0, %s162
      %s182 = sphi 0, %s184
      %s185 = sphi 0, %s182
      %s186 = sphi 0, %s185
      %s202 = sphi 0, %s186
    $region4: #{tpu_custom_call.1} parent=1 // loop_header_branch
      %23 = sbr.rel (%p21) target = $region8
    $region5: #{tpu_custom_call.1} parent=1 // loop_body
      %s25 = ssub.s32 %s20, 1
      %s26 = ssub.s32 %s20, 2
      %s27 = sadd.s32 %s20, 1
      %s28 = ssub.s32 %s20, %s27
      %p29 = scmp.eq.s32.totalorder %s28, 0
      %s31 = sadd.s32 %s30, 1
      %s32 = scalar_select %p29, %s30, %s31
      %p35 = pneg %p29
      %p36 = scmp.eq.s32.totalorder %s20, 1
      %p37 = por %p35, %p36
      %p38 = scmp.ne.s32.totalorder %s30, %s33
      %p39 = scmp.eq.s32.totalorder %s20, 0
      %p40 = por %p38, %p39
      %p41 = scmp.ne.s32.totalorder %s30, %s33
      %p42 = scmp.eq.s32.totalorder %s25, 1
      %p43 = por %p41, %p42
      %p44 = scmp.ne.s32.totalorder %s33, %s34
      %p45 = scmp.eq.s32.totalorder %s25, 0
      %p46 = por %p44, %p45
      %p47 = scmp.ne.s32.totalorder %s33, %s34
      %p48 = scmp.eq.s32.totalorder %s26, 1
      %p49 = por %p47, %p48
      %p51 = scmp.ne.s32.totalorder %s34, %s50
      %p52 = scmp.eq.s32.totalorder %s26, 0
      %p53 = por %p51, %p52
      %s55 = sadd.s32 %s54, 1
      %p58 = scmp.eq.s32.totalorder %s20, 1
      %p59 = scmp.ne.s32.totalorder %s54, %s56
      %p60 = scmp.eq.s32.totalorder %s20, 0
      %p61 = por %p59, %p60
      %p62 = scmp.ne.s32.totalorder %s54, %s56
      %p63 = scmp.eq.s32.totalorder %s25, 1
      %p64 = por %p62, %p63
      %p65 = scmp.ne.s32.totalorder %s56, %s57
      %p66 = scmp.eq.s32.totalorder %s25, 0
      %p67 = por %p65, %p66
      %p68 = scmp.ne.s32.totalorder %s56, %s57
      %p69 = scmp.eq.s32.totalorder %s26, 1
      %p70 = por %p68, %p69
      %p72 = scmp.ne.s32.totalorder %s57, %s71
      %p73 = scmp.eq.s32.totalorder %s26, 0
      %p74 = por %p72, %p73
      %s76 = sadd.s32 %s75, 1
      %p79 = scmp.eq.s32.totalorder %s20, 1
      %p80 = scmp.ne.s32.totalorder %s75, %s77
      %p81 = scmp.eq.s32.totalorder %s20, 0
      %p82 = por %p80, %p81
      %p83 = scmp.ne.s32.totalorder %s75, %s77
      %p84 = scmp.eq.s32.totalorder %s25, 1
      %p85 = por %p83, %p84
      %p86 = scmp.ne.s32.totalorder %s77, %s78
      %p87 = scmp.eq.s32.totalorder %s25, 0
      %p88 = por %p86, %p87
      %p89 = scmp.ne.s32.totalorder %s77, %s78
      %p90 = scmp.eq.s32.totalorder %s26, 1
      %p91 = por %p89, %p90
      %p93 = scmp.ne.s32.totalorder %s78, %s92
      %p94 = scmp.eq.s32.totalorder %s26, 0
      %p95 = por %p93, %p94
      %s97 = sadd.s32 %s96, 1
      %p100 = scmp.eq.s32.totalorder %s20, 1
      %p101 = scmp.ne.s32.totalorder %s96, %s98
      %p102 = scmp.eq.s32.totalorder %s20, 0
      %p103 = por %p101, %p102
      %p104 = scmp.ne.s32.totalorder %s96, %s98
      %p105 = scmp.eq.s32.totalorder %s25, 1
      %p106 = por %p104, %p105
      %p107 = scmp.ne.s32.totalorder %s98, %s99
      %p108 = scmp.eq.s32.totalorder %s25, 0
      %p109 = por %p107, %p108
      %p110 = scmp.ne.s32.totalorder %s98, %s99
      %p111 = scmp.eq.s32.totalorder %s26, 1
      %p112 = por %p110, %p111
      %p114 = scmp.ne.s32.totalorder %s99, %s113
      %p115 = scmp.eq.s32.totalorder %s26, 0
      %p116 = por %p114, %p115
      %s118 = sadd.s32 %s117, 1
      %p121 = scmp.eq.s32.totalorder %s20, 1
      %p122 = scmp.ne.s32.totalorder %s117, %s119
      %p123 = scmp.eq.s32.totalorder %s20, 0
      %p124 = por %p122, %p123
      %p125 = scmp.ne.s32.totalorder %s117, %s119
      %p126 = scmp.eq.s32.totalorder %s25, 1
      %p127 = por %p125, %p126
      %p128 = scmp.ne.s32.totalorder %s119, %s120
      %p129 = scmp.eq.s32.totalorder %s25, 0
      %p130 = por %p128, %p129
      %p131 = scmp.ne.s32.totalorder %s119, %s120
      %p132 = scmp.eq.s32.totalorder %s26, 1
      %p133 = por %p131, %p132
      %p135 = scmp.ne.s32.totalorder %s120, %s134
      %p136 = scmp.eq.s32.totalorder %s26, 0
      %p137 = por %p135, %p136
      %s139 = sadd.s32 %s138, 1
      %p142 = scmp.eq.s32.totalorder %s20, 1
      %p143 = scmp.ne.s32.totalorder %s138, %s140
      %p144 = scmp.eq.s32.totalorder %s20, 0
      %p145 = por %p143, %p144
      %p146 = scmp.ne.s32.totalorder %s138, %s140
      %p147 = scmp.eq.s32.totalorder %s25, 1
      %p148 = por %p146, %p147
      %p149 = scmp.ne.s32.totalorder %s140, %s141
      %p150 = scmp.eq.s32.totalorder %s25, 0
      %p151 = por %p149, %p150
      %p152 = scmp.ne.s32.totalorder %s140, %s141
      %p153 = scmp.eq.s32.totalorder %s26, 1
      %p154 = por %p152, %p153
      %p156 = scmp.ne.s32.totalorder %s141, %s155
      %p157 = scmp.eq.s32.totalorder %s26, 0
      %p158 = por %p156, %p157
      %s160 = sadd.s32 %s159, 1
      %p163 = scmp.eq.s32.totalorder %s20, 1
      %p164 = scmp.ne.s32.totalorder %s159, %s161
      %p165 = scmp.eq.s32.totalorder %s20, 0
      %p166 = por %p164, %p165
      %p167 = scmp.ne.s32.totalorder %s159, %s161
      %p168 = scmp.eq.s32.totalorder %s25, 1
      %p169 = por %p167, %p168
      %p170 = scmp.ne.s32.totalorder %s161, %s162
      %p171 = scmp.eq.s32.totalorder %s25, 0
      %p172 = por %p170, %p171
      %p173 = scmp.ne.s32.totalorder %s161, %s162
      %p174 = scmp.eq.s32.totalorder %s26, 1
      %p175 = por %p173, %p174
      %p177 = scmp.ne.s32.totalorder %s162, %s176
      %p178 = scmp.eq.s32.totalorder %s26, 0
      %p179 = por %p177, %p178
      %s180 = ssub.s32 %s20, %s27
      %p181 = scmp.eq.s32.totalorder %s180, 0
      %s183 = sadd.s32 %s182, 1
      %s184 = scalar_select %p181, %s182, %s183
      %p187 = pneg %p181
      %p188 = scmp.eq.s32.totalorder %s20, 1
      %p189 = por %p187, %p188
      %p190 = scmp.ne.s32.totalorder %s182, %s185
      %p191 = scmp.eq.s32.totalorder %s20, 0
      %p192 = por %p190, %p191
      %p193 = scmp.ne.s32.totalorder %s182, %s185
      %p194 = scmp.eq.s32.totalorder %s25, 1
      %p195 = por %p193, %p194
      %p196 = scmp.ne.s32.totalorder %s185, %s186
      %p197 = scmp.eq.s32.totalorder %s25, 0
      %p198 = por %p196, %p197
      %p199 = scmp.ne.s32.totalorder %s185, %s186
      %p200 = scmp.eq.s32.totalorder %s26, 1
      %p201 = por %p199, %p200
      %p203 = scmp.ne.s32.totalorder %s186, %s202
      %p204 = scmp.eq.s32.totalorder %s26, 0
      %p205 = por %p203, %p204
      %p206 = scmp.le.s32.totalorder 1, %s20
      %p207 = scmp.lt.s32.totalorder %s20, 3
      %p208 = pnand %p206, %p207
      %p209 = pneg %p208
      // Predicated region
      $region9: #{tpu_custom_call.1} parent=5 // pred_check
        _
      $region10: #{tpu_custom_call.1} parent=5 // pred_check_branch
        %211 = sbr.rel (%p208) target = $region12
      $region11: #{tpu_custom_call.1} parent=5 // pred_region
        %s212 = ssub.s32 %s20, 1
        // Predicated region
        $region13: #{tpu_custom_call.1} parent=11 // pred_check
          %p213 = pneg %p67
        $region14: #{tpu_custom_call.1} parent=11 // pred_check_branch
          %215 = sbr.rel (%p213) target = $region16
        $region15: #{tpu_custom_call.1} parent=11 // pred_region
          _
        $region16: #{tpu_custom_call.1} parent=11 // pred_fallthru
          _
        // Predicated region
        $region17: #{tpu_custom_call.1} parent=11 // pred_check
          %p216 = pneg %p88
        $region18: #{tpu_custom_call.1} parent=11 // pred_check_branch
          %218 = sbr.rel (%p216) target = $region20
        $region19: #{tpu_custom_call.1} parent=11 // pred_region
          _
        $region20: #{tpu_custom_call.1} parent=11 // pred_fallthru
          _
        // Predicated region
        $region21: #{tpu_custom_call.1} parent=11 // pred_check
          %p219 = pneg %p109
        $region22: #{tpu_custom_call.1} parent=11 // pred_check_branch
          %221 = sbr.rel (%p219) target = $region24
        $region23: #{tpu_custom_call.1} parent=11 // pred_region
          _
        $region24: #{tpu_custom_call.1} parent=11 // pred_fallthru
          _
        // Predicated region
        $region25: #{tpu_custom_call.1} parent=11 // pred_check
          %p222 = pneg %p130
        $region26: #{tpu_custom_call.1} parent=11 // pred_check_branch
          %224 = sbr.rel (%p222) target = $region28
        $region27: #{tpu_custom_call.1} parent=11 // pred_region
          _
        $region28: #{tpu_custom_call.1} parent=11 // pred_fallthru
          _
        // Predicated region
        $region29: #{tpu_custom_call.1} parent=11 // pred_check
          %p225 = pneg %p151
        $region30: #{tpu_custom_call.1} parent=11 // pred_check_branch
          %227 = sbr.rel (%p225) target = $region32
        $region31: #{tpu_custom_call.1} parent=11 // pred_region
          _
        $region32: #{tpu_custom_call.1} parent=11 // pred_fallthru
          _
        // Predicated region
        $region33: #{tpu_custom_call.1} parent=11 // pred_check
          %p228 = pneg %p172
        $region34: #{tpu_custom_call.1} parent=11 // pred_check_branch
          %230 = sbr.rel (%p228) target = $region36
        $region35: #{tpu_custom_call.1} parent=11 // pred_region
          _
        $region36: #{tpu_custom_call.1} parent=11 // pred_fallthru
          _
      $region12: #{tpu_custom_call.1} parent=5 // pred_fallthru
        _
      %p231 = scmp.lt.s32.totalorder %s20, 2
      // Predicated region
      $region37: #{tpu_custom_call.1} parent=5 // pred_check
        %p232 = pneg %p231
      $region38: #{tpu_custom_call.1} parent=5 // pred_check_branch
        %234 = sbr.rel (%p232) target = $region40
      $region39: #{tpu_custom_call.1} parent=5 // pred_region
        // Predicated region
        $region41: #{tpu_custom_call.1} parent=39 // pred_check
          %p235 = pneg %p40
        $region42: #{tpu_custom_call.1} parent=39 // pred_check_branch
          %237 = sbr.rel (%p235) target = $region44
        $region43: #{tpu_custom_call.1} parent=39 // pred_region
          %s238 = sand.u32 %s30, 1
          %s239 = scalar_lea.sflag [#allocation4], %s238
          %s240 = sand.u32 %s30, 1
          %s241 = smul.addr %s240, 8
          %s242 = scalar_lea.vmem [#allocation3], %s241
          %244 = vsyncadd %s239, 0
          %s245 = smul.addr %s20, 2
          %s246 = smul.addr %s245, 4
          %s247 = scalar_lea.hbm %s0, %s246
          %s249 = sshll.u32 %s247, 4
          %s250 = int_to_ptr.hbm [resolvable:$true] %s249
          %s251 = sshll.u32 %s242, 4
          %s252 = int_to_ptr.vmem [resolvable:$true] %s251
          %254 = dma.hbm_to_vmem [thread:$0]  %s250, 128, %s252, %s239
        $region44: #{tpu_custom_call.1} parent=39 // pred_fallthru
          _
      $region40: #{tpu_custom_call.1} parent=5 // pred_fallthru
        _
      %p255 = scmp.le.s32.totalorder 1, %s20
      %p256 = scmp.lt.s32.totalorder %s20, 3
      %p257 = pnand %p255, %p256
      %p258 = pneg %p257
      // Predicated region
      $region45: #{tpu_custom_call.1} parent=5 // pred_check
        _
      $region46: #{tpu_custom_call.1} parent=5 // pred_check_branch
        %260 = sbr.rel (%p257) target = $region48
      $region47: #{tpu_custom_call.1} parent=5 // pred_region
        %s261 = ssub.s32 %s20, 1
        %s262 = sand.u32 %s33, 1
        %s263 = scalar_lea.sflag [#allocation4], %s262
        %s264 = sand.u32 %s33, 1
        %s265 = smul.addr %s264, 8
        %s266 = scalar_lea.vmem [#allocation3], %s265
        // Predicated region
        $region49: #{tpu_custom_call.1} parent=47 // pred_check
          %p267 = pneg %p46
        $region50: #{tpu_custom_call.1} parent=47 // pred_check_branch
          %269 = sbr.rel (%p267) target = $region52
        $region51: #{tpu_custom_call.1} parent=47 // pred_region
          %271 = dma.done %s263, 128
        $region52: #{tpu_custom_call.1} parent=47 // pred_fallthru
          _
        %s272 = sand.u32 %s33, 1
        %s273 = scalar_lea.sflag [#allocation4], %s272
        %s274 = sand.u32 %s33, 1
        %s275 = smul.addr %s274, 8
        %s276 = scalar_lea.vmem [#allocation3], %s275
        %p277 = pneg %p46
        %p278 = pneg %p43
        %p279 = pneg %p67
        %p280 = pneg %p64
        %p281 = pneg %p88
        %p282 = pneg %p85
        %p283 = pneg %p109
        %p284 = pneg %p106
        %p285 = pneg %p130
        %p286 = pneg %p127
        %p287 = pneg %p151
        %p288 = pneg %p148
        %p289 = pneg %p172
        %p290 = pneg %p169
        %p291 = pneg %p198
        %p292 = pneg %p195
        %s293 = sand.u32 %s185, 1
        %s294 = scalar_lea.sflag [#allocation5], %s293
        %s295 = sand.u32 %s185, 1
        %s296 = smul.addr %s295, 8
        %s297 = scalar_lea.vmem [#allocation6], %s296
        %v298 = vld [vmem:[%s266] sm:$0xff]
        %300 = vst [vmem:[#allocation1] ss:$2 sm:$0xff] %v298
        %v301 = vld.sshfl [vmem:[#allocation1] sm:$0xff pattern:$0x75316420]
        %v302 = vld.sshfl [vmem:[#allocation1 + $0x8] sm:$0xff pattern:$0x75316420]
        %vm305 = vcmask 1043456
        %v306 = vsel %vm305, %v301, 0.0
        %v307 = vsel %vm305, %v302, 0.0
        %v308 = vadd.f32 %v306, %v307
        %309 = vadd.xlane.f32.xlu0 %v308
        %v310 = vpop.xlane.xlu0 %309
        %v311 = vrcp.pop 256.0
        %v312 = vmul.f32 256.0, %v311
        %v313 = vsub.f32 1.0, %v312
        %v314 = vmul.f32 %v311, %v313
        %v315 = vadd.f32 %v311, %v314
        %vm316 = vweird.f32 %v311
        %v317 = vsel %vm316, %v311, %v315
        %v318 = vmul.f32 %v310, %v317
        %v319 = vld [vmem:[%s2] sm:$0x3]
        %v320 = vld [vmem:[%s3] sm:$0x3]
        %vm321 = vcmask 31744
        %v323 = vsel %vm321, %v319, 0
        %v326 = vsel %vm305, %v318, 0
        %328 = vmatpush.msra.mxu0 0.0
        %329 = vmatpush.msra.mxu0 0.0
        %330 = vmatpush.msra.mxu0 0.0
        %331 = vmatpush.msra.mxu0 0.0
        %332 = vmatpush.msra.mxu0 0.0
        %333 = vmatpush.msra.mxu0 0.0
        %334 = vmatpush.msra.mxu0 0.0
        %335 = vmatpush.msra.mxu0 0.0
        %336 = vmatpush.msra.mxu0 0.0
        %337 = vmatpush.msra.mxu0 0.0
        %338 = vmatpush.msra.mxu0 0.0
        %339 = vmatpush.msra.mxu0 0.0
        %340 = vmatpush.msra.mxu0 0.0
        %341 = vmatpush.msra.mxu0 0.0
        %342 = vmatpush.msra.mxu0 0.0
        %343 = vmatpush.msra.mxu0 %v326
        %344 = vmatmul.f32.gmra.mxu0 %v323
        %v345 = vpop.f32.mrf.mxu0
        %v346 = vadd.f32 %v320, %v345
        %347 = vdwg.mxu0
        %vm348 = vcmp.gt.f32.partialorder %v346, 0.0
        %v349 = vmin.f32 %v346, 0.0
        %v350 = vmul.f32 %v349, 1.442695
        %v351 = vpow.pop %v350
        %v352 = vsub.f32 %v351, 1.0
        %v353 = vsel %vm348, %v346, %v352
        %v354 = vld [vmem:[%s4] sm:$0xf]
        %v355 = vld [vmem:[%s5] sm:$0xf]
        %vm356 = vcmask 15360
        %v358 = vsel %vm356, %v354, 0
        %vm360 = vcmask 1041408
        %v362 = vsel %vm360, %v353, 0
        %364 = vmatpush.msra.mxu0 0.0
        %365 = vmatpush.msra.mxu0 0.0
        %366 = vmatpush.msra.mxu0 0.0
        %367 = vmatpush.msra.mxu0 0.0
        %368 = vmatpush.msra.mxu0 0.0
        %369 = vmatpush.msra.mxu0 0.0
        %370 = vmatpush.msra.mxu0 0.0
        %371 = vmatpush.msra.mxu0 0.0
        %372 = vmatpush.msra.mxu0 0.0
        %373 = vmatpush.msra.mxu0 0.0
        %374 = vmatpush.msra.mxu0 0.0
        %375 = vmatpush.msra.mxu0 0.0
        %376 = vmatpush.msra.mxu0 0.0
        %377 = vmatpush.msra.mxu0 0.0
        %378 = vmatpush.msra.mxu0 0.0
        %379 = vmatpush.msra.mxu0 %v362
        %380 = vmatmul.f32.gmra.mxu0 %v358
        %v381 = vpop.f32.mrf.mxu0
        %v382 = vadd.f32 %v355, %v381
        %383 = vdwg.mxu0
        %v384 = vxor.u32 %v382, 2147483648
        %v385 = vmul.f32 %v384, 1.442695
        %v386 = vpow.pop %v385
        %v387 = vadd.f32 %v386, 1.0
        %v388 = vrcp.pop %v387
        %v389 = vmul.f32 %v387, %v388
        %v390 = vsub.f32 1.0, %v389
        %v391 = vmul.f32 %v388, %v390
        %v392 = vadd.f32 %v388, %v391
        %vm393 = vweird.f32 %v387
        %vm394 = vweird.f32 %v388
        %vm395 = vmor %vm393, %vm394
        %v396 = vsel %vm395, %v388, %v392
        %v397 = vand.u32 2147483647, %v387
        %vm398 = vcmp.eq.f32.partialorder %v397, 8.507059e+37
        %v399 = vand.u32 %v387, 2147483648
        %v400 = vor.u32 1.1754944e-38, %v399
        %v401 = vsel %vm398, %v400, %v396
        %v402 = vmul.f32 1.0, %v401
        %v403 = vld [vmem:[%s1] sm:$0x1]
        %s404 = sld [smem:[#allocation2]]
        %v405 = vstv %s404
        %406 = vst [vmem:[#allocation1] ss:$2 sm:$0xff] %v298
        %v407 = vld.sshfl [vmem:[#allocation1] sm:$0xff pattern:$0x75316420]
        %v408 = vld.sshfl [vmem:[#allocation1 + $0x8] sm:$0xff pattern:$0x75316420]
        %v410 = vsel %vm321, %v403, 0
        %v412 = vsel %vm305, %v407, 0
        %v414 = vsel %vm305, %v408, 0
        %416 = vmatpush.msra.mxu0 0.0
        %417 = vmatpush.msra.mxu0 0.0
        %418 = vmatpush.msra.mxu0 0.0
        %419 = vmatpush.msra.mxu0 0.0
        %420 = vmatpush.msra.mxu0 0.0
        %421 = vmatpush.msra.mxu0 0.0
        %422 = vmatpush.msra.mxu0 0.0
        %423 = vmatpush.msra.mxu0 0.0
        %424 = vmatpush.msra.mxu0 0.0
        %425 = vmatpush.msra.mxu0 0.0
        %426 = vmatpush.msra.mxu0 0.0
        %427 = vmatpush.msra.mxu0 0.0
        %428 = vmatpush.msra.mxu0 0.0
        %429 = vmatpush.msra.mxu0 0.0
        %430 = vmatpush.msra.mxu0 0.0
        %431 = vmatpush.msra.mxu0 %v412
        %432 = vmatmul.f32.gmra.mxu0 %v410
        %v433 = vpop.f32.mrf.mxu0
        %v434 = vadd.f32 %v405, %v433
        %435 = vdwg.mxu0
        %436 = vmatpush.msra.mxu0 0.0
        %437 = vmatpush.msra.mxu0 0.0
        %438 = vmatpush.msra.mxu0 0.0
        %439 = vmatpush.msra.mxu0 0.0
        %440 = vmatpush.msra.mxu0 0.0
        %441 = vmatpush.msra.mxu0 0.0
        %442 = vmatpush.msra.mxu0 0.0
        %443 = vmatpush.msra.mxu0 0.0
        %444 = vmatpush.msra.mxu0 0.0
        %445 = vmatpush.msra.mxu0 0.0
        %446 = vmatpush.msra.mxu0 0.0
        %447 = vmatpush.msra.mxu0 0.0
        %448 = vmatpush.msra.mxu0 0.0
        %449 = vmatpush.msra.mxu0 0.0
        %450 = vmatpush.msra.mxu0 0.0
        %451 = vmatpush.msra.mxu0 %v414
        %452 = vmatmul.f32.gmra.mxu0 %v410
        %v453 = vpop.f32.mrf.mxu0
        %v454 = vadd.f32 %v405, %v453
        %455 = vdwg.mxu0
        %v456 = vxor.u32 %v434, 2147483648
        %v457 = vxor.u32 %v454, 2147483648
        %v458 = vmul.f32 %v456, 1.442695
        %v459 = vpow.pop %v458
        %v460 = vmul.f32 %v457, 1.442695
        %v461 = vpow.pop %v460
        %v462 = vadd.f32 %v459, 1.0
        %v463 = vadd.f32 %v461, 1.0
        %v464 = vrcp.pop %v462
        %v465 = vmul.f32 %v462, %v464
        %v466 = vsub.f32 1.0, %v465
        %v467 = vmul.f32 %v464, %v466
        %v468 = vadd.f32 %v464, %v467
        %vm469 = vweird.f32 %v462
        %vm470 = vweird.f32 %v464
        %vm471 = vmor %vm469, %vm470
        %v472 = vsel %vm471, %v464, %v468
        %v473 = vand.u32 2147483647, %v462
        %vm474 = vcmp.eq.f32.partialorder %v473, 8.507059e+37
        %v475 = vand.u32 %v462, 2147483648
        %v476 = vor.u32 1.1754944e-38, %v475
        %v477 = vsel %vm474, %v476, %v472
        %v478 = vmul.f32 1.0, %v477
        %v479 = vrcp.pop %v463
        %v480 = vmul.f32 %v463, %v479
        %v481 = vsub.f32 1.0, %v480
        %v482 = vmul.f32 %v479, %v481
        %v483 = vadd.f32 %v479, %v482
        %vm484 = vweird.f32 %v463
        %vm485 = vweird.f32 %v479
        %vm486 = vmor %vm484, %vm485
        %v487 = vsel %vm486, %v479, %v483
        %v488 = vand.u32 2147483647, %v463
        %vm489 = vcmp.eq.f32.partialorder %v488, 8.507059e+37
        %v490 = vand.u32 %v463, 2147483648
        %v491 = vor.u32 1.1754944e-38, %v490
        %v492 = vsel %vm489, %v491, %v487
        %v493 = vmul.f32 1.0, %v492
        %v494 = vperm.slane %v478, 0
        %v495 = vperm.slane %v493, 0
        %497 = vset.pattern.permute.xlu0 0
        %498 = vperm.xlu0 %497, %v402
        %v499 = vpop.permute.xlu0 %498
        %v501 = vadd.f32 %v494, %v499
        %v502 = vadd.f32 %v495, %v499
        %v505 = vrot.slane %v502, 4
        %v506 = vsel %vm305, %v501, %v505
        %v508 = vmul.f32 %v298, %v506
        %509 = vst [vmem:[%s297] sm:$0xff] %v508
        %s510 = sand.u32 %s185, 1
        %s511 = scalar_lea.sflag [#allocation5], %s510
        %s512 = sand.u32 %s185, 1
        %s513 = smul.addr %s512, 8
        %s514 = scalar_lea.vmem [#allocation6], %s513
        // Predicated region
        $region53: #{tpu_custom_call.1} parent=47 // pred_check
          %p515 = pneg %p195
        $region54: #{tpu_custom_call.1} parent=47 // pred_check_branch
          %517 = sbr.rel (%p515) target = $region56
        $region55: #{tpu_custom_call.1} parent=47 // pred_region
          %519 = vsyncadd %s511, 0
          %s520 = smul.addr %s25, 2
          %s521 = smul.addr %s520, 4
          %s522 = scalar_lea.hbm %s7, %s521
          %s524 = sshll.u32 %s514, 4
          %s525 = int_to_ptr.vmem [resolvable:$true] %s524
          %s526 = sshll.u32 %s522, 4
          %s527 = int_to_ptr.hbm [resolvable:$true] %s526
          %529 = dma.vmem_to_hbm [thread:$0]  %s525, 128, %s527, %s511
        $region56: #{tpu_custom_call.1} parent=47 // pred_fallthru
          _
      $region48: #{tpu_custom_call.1} parent=5 // pred_fallthru
        _
      %p530 = scmp.le.s32.totalorder 2, %s20
      // Predicated region
      $region57: #{tpu_custom_call.1} parent=5 // pred_check
        %p531 = pneg %p530
      $region58: #{tpu_custom_call.1} parent=5 // pred_check_branch
        %533 = sbr.rel (%p531) target = $region60
      $region59: #{tpu_custom_call.1} parent=5 // pred_region
        %s534 = ssub.s32 %s20, 2
        // Predicated region
        $region61: #{tpu_custom_call.1} parent=59 // pred_check
          %p535 = pneg %p201
        $region62: #{tpu_custom_call.1} parent=59 // pred_check_branch
          %537 = sbr.rel (%p535) target = $region64
        $region63: #{tpu_custom_call.1} parent=59 // pred_region
          %s538 = sand.u32 %s186, 1
          %s539 = scalar_lea.sflag [#allocation5], %s538
          %s540 = sand.u32 %s186, 1
          %s541 = smul.addr %s540, 8
          %s542 = scalar_lea.vmem [#allocation6], %s541
          %544 = dma.done %s539, 128
        $region64: #{tpu_custom_call.1} parent=59 // pred_fallthru
          _
      $region60: #{tpu_custom_call.1} parent=5 // pred_fallthru
        _
    $region6: #{tpu_custom_call.1} parent=1 // loop_footer
      %s24 = sadd.s32 1, %s20
    $region7: #{tpu_custom_call.1} parent=1 // loop_footer_branch
      %19 = sbr.rel target = $region3
    $region8: #{tpu_custom_call.1} parent=1 // loop_exit
      _
    %545 = vsyncpa [#allocation4], 1
    %s546 = scalar_lea.sflag [#allocation4], 1
    %547 = vsyncpa %s546, 1
    %548 = vsyncpa [#allocation5], 1
    %s549 = scalar_lea.sflag [#allocation5], 1
    %550 = vsyncpa %s549, 1

</llo_original>
